<compile_context>
chip_gen: v7x
topology: tpu7x:2x2x1
jax: 0.10.0
libtpu: 0.0.40
codegen_flags: <defaults>
</compile_context>

<pallas_src>
import math

import numpy as np
import jax
import jax.numpy as jnp
from jax.experimental import pallas as pl
from jax.experimental.pallas import tpu as pltpu


_PARAM_ORDER = ("wqkv", "bqkv", "wo", "bo",
                "w1", "b1", "w2", "b2",
                "g1", "be1", "g2", "be2")


def _encoder_layer_kernel(x_ref,
                          wqkv_ref, bqkv_ref, wo_ref, bo_ref,
                          w1_ref, b1_ref, w2_ref, b2_ref,
                          g1_ref, be1_ref, g2_ref, be2_ref,
                          o_ref):
    bt, L, D = x_ref.shape                      # static block shape
    M = bt * L
    n_heads = wqkv_ref.shape[0]
    dk = wqkv_ref.shape[2] // 3
    n_chunks = w1_ref.shape[0]
    mxu_dtype = wqkv_ref.dtype                  # f32 or bf16 (weight dtype)

    # Flatten folded batch into the matmul M dimension (major-dim merge: cheap).
    x = x_ref[...].reshape(M, D).astype(jnp.float32)
    xm = x.astype(mxu_dtype)

    def mm(a, b):
        # MXU matmul: operands in weight dtype, accumulate in f32.
        return jnp.dot(a.astype(mxu_dtype), b, preferred_element_type=jnp.float32)

    # ---- Multi-head self-attention (attn_mask=None) -------------------------
    # Accumulator starts from the broadcast out-projection bias (hoisted once,
    # saves a separate (M, D) add).
    acc0 = jnp.broadcast_to(bo_ref[...], (M, D)).astype(jnp.float32)

    def head_body(h, acc):
        # Fused QKV projection: one matmul with N = 3*dk per head; 1/sqrt(dk) is
        # pre-folded into the Q columns so scores are never scaled in-kernel.
        qkv = mm(xm, wqkv_ref[h]) + bqkv_ref[h]                  # (M, 3*dk) f32
        q3 = qkv[:, 0 * dk:1 * dk].reshape(bt, L, dk).astype(mxu_dtype)
        k3 = qkv[:, 1 * dk:2 * dk].reshape(bt, L, dk).astype(mxu_dtype)
        v3 = qkv[:, 2 * dk:3 * dk].reshape(bt, L, dk).astype(mxu_dtype)

        # Batched over the folded batch; contracting dk (no explicit k.T).
        s = jnp.einsum("bld,bsd->bls", q3, k3,
                       preferred_element_type=jnp.float32)       # (bt, L, L)
        s = s - jnp.max(s, axis=-1, keepdims=True)
        p = jnp.exp(s)                                           # unnormalized
        denom = jnp.sum(p, axis=-1, keepdims=True)               # (bt, L, 1)

        # PV with unnormalized probabilities (<=1, bf16-safe); normalize the
        # (bt, L, dk) output instead of the (bt, L, L) probabilities.
        oh = jnp.einsum("bls,bsd->bld", p.astype(mxu_dtype), v3,
                        preferred_element_type=jnp.float32)      # (bt, L, dk)
        oh = oh * pl.reciprocal(denom, approx=True)              # EUP slot

        # Fused out-projection (no concatenate of heads).
        return acc + mm(oh.reshape(M, dk), wo_ref[h])

    # fori_loop bounds per-head live ranges (vs. an n_heads-wide static unroll).
    new_x = jax.lax.fori_loop(0, n_heads, head_body, acc0)       # (M, D)

    def layer_norm(val, g_ref, b_ref):
        mu = jnp.mean(val, axis=-1, keepdims=True)
        c = val - mu                                             # hoisted once
        var = jnp.mean(c * c, axis=-1, keepdims=True)
        return c * jax.lax.rsqrt(var + 1e-5) * g_ref[...] + b_ref[...]

    # TODO(synk): dropout layers are identity (inference mode); no RNG mask.
    y = layer_norm(x + new_x, g1_ref, be1_ref)                   # residual + norm1
    ym = y.astype(mxu_dtype)                                     # hoisted cast

    # ---- FFN: conv1(k=1) -> relu -> conv2(k=1), tiled over d_ff chunks so the
    # (M, d_ff) intermediate is never fully live (VMEM / store-slot pressure). --
    y2_0 = jnp.broadcast_to(b2_ref[...], (M, D)).astype(jnp.float32)

    def ffn_body(c, y2):
        h1 = jnp.maximum(mm(ym, w1_ref[c]) + b1_ref[c], 0.0)     # (M, ff_chunk)
        return y2 + mm(h1, w2_ref[c])

    y2 = jax.lax.fori_loop(0, n_chunks, ffn_body, y2_0)          # (M, D)

    out = layer_norm(y + y2, g2_ref, be2_ref)                    # residual + norm2
    o_ref[...] = out.reshape(bt, L, D).astype(o_ref.dtype)


def _pick_batch_tile(B, L, target_m=256):
    """Fold batch elements so matmul M = bt*L ~= target (MXU-fat), preferring an
    even number of grid steps >= 2 (keeps both v7x TensorCores busy) whenever
    that does not shrink M much below the target / the best single fold.
    (v6e: pass target_m=512..1024 — weights are VMEM-resident anyway.)"""
    divisors = [d for d in range(1, B + 1) if B % d == 0]
    fits = [d for d in divisors if d * L <= max(target_m, L)]
    bt = max(fits) if fits else 1
    for d in sorted(fits, reverse=True):
        steps = B // d
        if steps >= 2 and steps % 2 == 0 and (d * L * 2 >= target_m
                                              or d * L * 2 >= bt * L):
            bt = d
            break
    return bt


def _prepare_params(params, n_heads, weight_dtype, ff_chunk):
    """Host-side (free) weight rearrangement:
       * head-major fused QKV stack (H, D, 3*dk) with 1/sqrt(dk) folded into Q,
       * head-major out-projection stack (H, dk, D),
       * d_ff-chunked FFN stacks (C, D, c) / (C, c, D),
       * optional bf16 weight cast (biases / layernorm params stay f32)."""
    D = params["wq"].shape[0]
    d_ff = params["w1"].shape[1]
    dk = D // n_heads
    n_chunks = d_ff // ff_chunk
    scale = 1.0 / math.sqrt(dk)

    def cast_w(w):
        return w.astype(weight_dtype) if weight_dtype is not None else w

    wq = (params["wq"] * scale).reshape(D, n_heads, dk)
    wk = params["wk"].reshape(D, n_heads, dk)
    wv = params["wv"].reshape(D, n_heads, dk)
    wqkv = jnp.concatenate([wq, wk, wv], axis=-1).transpose(1, 0, 2)  # (H, D, 3dk)

    bq = (params["bq"] * scale).reshape(n_heads, 1, dk)
    bk = params["bk"].reshape(n_heads, 1, dk)
    bv = params["bv"].reshape(n_heads, 1, dk)
    bqkv = jnp.concatenate([bq, bk, bv], axis=-1)                     # (H, 1, 3dk)

    return {
        "wqkv": cast_w(wqkv),
        "bqkv": bqkv,
        "wo": cast_w(params["wo"].reshape(n_heads, dk, D)),
        "bo": params["bo"],
        "w1": cast_w(params["w1"].reshape(D, n_chunks, ff_chunk).transpose(1, 0, 2)),
        "b1": params["b1"].reshape(n_chunks, 1, ff_chunk),
        "w2": cast_w(params["w2"].reshape(n_chunks, ff_chunk, D)),
        "b2": params["b2"],
        "g1": params["g1"], "be1": params["be1"],
        "g2": params["g2"], "be2": params["be2"],
    }


def encoder_layer_pallas(x, params, n_heads, *, weight_dtype=None,
                         batch_tile=None, target_m=256, ff_chunk=None):
    # Production note: pass weight_dtype=jnp.bfloat16 on v5e/v6e/v7x (halves
    # weight VMEM/HBM traffic, doubles MXU throughput); f32 kept as exact default.
    B, L, D = x.shape
    d_ff = params["w1"].shape[1]

    if ff_chunk is None:
        ff_chunk = next((c for c in (512, 256, 128) if d_ff % c == 0), d_ff)
    assert d_ff % ff_chunk == 0, "ff_chunk must divide d_ff"

    prepped = _prepare_params(params, n_heads, weight_dtype, ff_chunk)
    ordered = [prepped[k] for k in _PARAM_ORDER]

    bt = batch_tile if batch_tile is not None else _pick_batch_tile(B, L, target_m)
    assert B % bt == 0, "batch tile must divide batch"
    grid = (B // bt,)

    # Grid-invariant params: constant index_map -> fetched once, re-used across
    # grid steps (see module TODO about single-buffering them on v7x).
    param_specs = [pl.BlockSpec(p.shape, lambda b, n=p.ndim: (0,) * n)
                   for p in ordered]

    # Advisory cost so XLA can overlap surrounding ops with this kernel.
    m_total = B * L
    flops = 2 * m_total * (4 * D * D + 2 * L * D + 2 * D * d_ff)
    transcendentals = B * n_heads * L * L + 4 * B * L
    param_bytes = sum(int(p.size) * p.dtype.itemsize for p in ordered)
    bytes_accessed = 2 * int(x.size) * x.dtype.itemsize + param_bytes
    cost = pl.CostEstimate(flops=int(flops),
                           transcendentals=int(transcendentals),
                           bytes_accessed=int(bytes_accessed))

    out = pl.pallas_call(
        _encoder_layer_kernel,
        out_shape=jax.ShapeDtypeStruct((B, L, D), x.dtype),
        grid=grid,
        in_specs=[pl.BlockSpec((bt, L, D), lambda b: (b, 0, 0))] + param_specs,
        out_specs=pl.BlockSpec((bt, L, D), lambda b: (b, 0, 0)),
        compiler_params=pltpu.CompilerParams(
            dimension_semantics=("parallel",),
            vmem_limit_bytes=48 * 1024 * 1024),
        cost_estimate=cost,
    )(x, *ordered)
    return out, None   # attn is None (FullAttention(output_attention=False))


def encoder_layer_ref(x, params, n_heads):
    """Pure-JAX reference mirroring the PyTorch forward (eval mode)."""
    B, L, D = x.shape
    dk = D // n_heads

    def ln(v, g, b):
        mu = v.mean(-1, keepdims=True)
        var = ((v - mu) ** 2).mean(-1, keepdims=True)
        return (v - mu) / jnp.sqrt(var + 1e-5) * g + b

    q = (x @ params["wq"] + params["bq"]).reshape(B, L, n_heads, dk)
    k = (x @ params["wk"] + params["bk"]).reshape(B, L, n_heads, dk)
    v = (x @ params["wv"] + params["bv"]).reshape(B, L, n_heads, dk)
    s = jnp.einsum("blhe,bshe->bhls", q, k) / math.sqrt(dk)
    a = jax.nn.softmax(s, axis=-1)
    o = jnp.einsum("bhls,bshd->blhd", a, v).reshape(B, L, D)
    new_x = o @ params["wo"] + params["bo"]
    x1 = x + new_x
    y = ln(x1, params["g1"], params["be1"])
    h1 = jax.nn.relu(y @ params["w1"] + params["b1"])
    y2 = h1 @ params["w2"] + params["b2"]
    return ln(y + y2, params["g2"], params["be2"])


def init_params(key, d_model, d_ff):
    ks = jax.random.split(key, 8)
    f32 = jnp.float32

    def w(k, shape, scale):
        return jax.random.normal(k, shape, dtype=f32) * scale

    return {
        "wq": w(ks[0], (d_model, d_model), 0.1),
        "wk": w(ks[1], (d_model, d_model), 0.1),
        "wv": w(ks[2], (d_model, d_model), 0.1),
        "wo": w(ks[3], (d_model, d_model), 0.1),
        "bq": w(ks[4], (1, d_model), 0.01),
        "bk": w(ks[5], (1, d_model), 0.01),
        "bv": w(ks[6], (1, d_model), 0.01),
        "bo": jnp.zeros((1, d_model), f32),
        # conv1: torch weight (d_ff, d_model, 1) -> stored transposed (d_model, d_ff)
        "w1": w(ks[7], (d_model, d_ff), 0.05),
        "b1": jnp.zeros((1, d_ff), f32),
        # conv2: torch weight (d_model, d_ff, 1) -> stored transposed (d_ff, d_model)
        "w2": w(jax.random.fold_in(key, 99), (d_ff, d_model), 0.05),
        "b2": jnp.zeros((1, d_model), f32),
        "g1": jnp.ones((1, d_model), f32),
        "be1": jnp.zeros((1, d_model), f32),
        "g2": jnp.ones((1, d_model), f32),
        "be2": jnp.zeros((1, d_model), f32),
    }


if __name__ == "__main__":
    B, L, D, H = 2, 8, 32, 4
    d_ff = 4 * D   # 128

    key = jax.random.PRNGKey(0)
    kx, kp = jax.random.split(key)
    x = jax.random.normal(kx, (B, L, D), dtype=jnp.float32)
    params = init_params(kp, D, d_ff)

    with jax.default_matmul_precision("highest"):
        ref = jax.block_until_ready(encoder_layer_ref(x, params, n_heads=H))

    # f32-weight path (v5e-friendly: all elementwise math f32).
    out_f32, attn = encoder_layer_pallas(x, params, n_heads=H)
    out_f32 = jax.block_until_ready(out_f32)
    np.testing.assert_allclose(np.asarray(out_f32), np.asarray(ref),
                               rtol=2e-3, atol=2e-3)

    # bf16-weight path (v6e / v7x production path: bf16 MXU operands, f32
    # accumulation, f32 softmax / layernorm) — looser tolerance (bf16 rounding).
    out_bf16, _ = encoder_layer_pallas(x, params, n_heads=H,
                                       weight_dtype=jnp.bfloat16)
    out_bf16 = jax.block_until_ready(out_bf16)
    np.testing.assert_allclose(np.asarray(out_bf16), np.asarray(ref),
                               rtol=4e-2, atol=4e-2)

    print("KERNEL_OK")
</pallas_src>

<mosaic_0001>
module attributes {stable_mosaic.version = 11 : i64} {
  func.func @_encoder_layer_kernel(%arg0: i32, %arg1: memref<1x8x32xf32, #tpu.memory_space<vmem>>, %arg2: memref<4x32x24xf32, #tpu.memory_space<vmem>>, %arg3: memref<4x1x24xf32, #tpu.memory_space<vmem>>, %arg4: memref<4x8x32xf32, #tpu.memory_space<vmem>>, %arg5: memref<1x32xf32, #tpu.memory_space<vmem>>, %arg6: memref<1x32x128xf32, #tpu.memory_space<vmem>>, %arg7: memref<1x1x128xf32, #tpu.memory_space<vmem>>, %arg8: memref<1x128x32xf32, #tpu.memory_space<vmem>>, %arg9: memref<1x32xf32, #tpu.memory_space<vmem>>, %arg10: memref<1x32xf32, #tpu.memory_space<vmem>>, %arg11: memref<1x32xf32, #tpu.memory_space<vmem>>, %arg12: memref<1x32xf32, #tpu.memory_space<vmem>>, %arg13: memref<1x32xf32, #tpu.memory_space<vmem>>, %arg14: memref<1x8x32xf32, #tpu.memory_space<vmem>>) attributes {dimension_semantics = [#tpu.dimension_semantics<parallel>], iteration_bounds = array<i64: 2>, scalar_prefetch = 0 : i64, scratch_operands = 0 : i64, tpu.core_type = #tpu.core_type<tc>, window_params = [{transform_indices = @transform_0, window_bounds = array<i64: 1, 8, 32>}, {pipeline_mode = #tpu.pipeline_mode<synchronous>, transform_indices = @transform_1, window_bounds = array<i64: 4, 32, 24>}, {pipeline_mode = #tpu.pipeline_mode<synchronous>, transform_indices = @transform_2, window_bounds = array<i64: 4, 1, 24>}, {pipeline_mode = #tpu.pipeline_mode<synchronous>, transform_indices = @transform_3, window_bounds = array<i64: 4, 8, 32>}, {pipeline_mode = #tpu.pipeline_mode<synchronous>, transform_indices = @transform_4, window_bounds = array<i64: 1, 32>}, {pipeline_mode = #tpu.pipeline_mode<synchronous>, transform_indices = @transform_5, window_bounds = array<i64: 1, 32, 128>}, {pipeline_mode = #tpu.pipeline_mode<synchronous>, transform_indices = @transform_6, window_bounds = array<i64: 1, 1, 128>}, {pipeline_mode = #tpu.pipeline_mode<synchronous>, transform_indices = @transform_7, window_bounds = array<i64: 1, 128, 32>}, {pipeline_mode = #tpu.pipeline_mode<synchronous>, transform_indices = @transform_8, window_bounds = array<i64: 1, 32>}, {pipeline_mode = #tpu.pipeline_mode<synchronous>, transform_indices = @transform_9, window_bounds = array<i64: 1, 32>}, {pipeline_mode = #tpu.pipeline_mode<synchronous>, transform_indices = @transform_10, window_bounds = array<i64: 1, 32>}, {pipeline_mode = #tpu.pipeline_mode<synchronous>, transform_indices = @transform_11, window_bounds = array<i64: 1, 32>}, {pipeline_mode = #tpu.pipeline_mode<synchronous>, transform_indices = @transform_12, window_bounds = array<i64: 1, 32>}, {transform_indices = @transform_13, window_bounds = array<i64: 1, 8, 32>}]} {
    %c0 = arith.constant 0 : index
    %c0_0 = arith.constant 0 : index
    %c0_1 = arith.constant 0 : index
    %0 = vector.load %arg1[%c0, %c0_0, %c0_1] : memref<1x8x32xf32, #tpu.memory_space<vmem>>, vector<1x8x32xf32>
    %1 = vector.shape_cast %0 : vector<1x8x32xf32> to vector<8x32xf32>
    %c0_2 = arith.constant 0 : index
    %c0_3 = arith.constant 0 : index
    %2 = vector.load %arg5[%c0_2, %c0_3] : memref<1x32xf32, #tpu.memory_space<vmem>>, vector<1x32xf32>
    %3 = vector.shape_cast %2 : vector<1x32xf32> to vector<1x32xf32>
    %4 = vector.broadcast %3 : vector<1x32xf32> to vector<8x32xf32>
    %c0_i32 = arith.constant 0 : i32
    %c4_i32 = arith.constant 4 : i32
    %5 = arith.addi %c0_i32, %c4_i32 : i32
    %c1_i32 = arith.constant 1 : i32
    %6 = scf.for %arg15 = %c0_i32 to %5 step %c1_i32 iter_args(%arg16 = %4) -> (vector<8x32xf32>)  : i32 {
      %74 = arith.index_cast %arg15 : i32 to index
      %c0_38 = arith.constant 0 : index
      %c0_39 = arith.constant 0 : index
      %75 = vector.load %arg2[%74, %c0_38, %c0_39] : memref<4x32x24xf32, #tpu.memory_space<vmem>>, vector<1x32x24xf32>
      %76 = vector.shape_cast %75 : vector<1x32x24xf32> to vector<32x24xf32>
      %cst_40 = arith.constant dense<0.000000e+00> : vector<8x24xf32>
      %77 = tpu.matmul %1, %76, %cst_40 {dimension_numbers = #tpu.dot_dimension_numbers<[1], [0], [0], [1], [0, 0, 1, 1], [], []>} : vector<8x32xf32>, vector<32x24xf32>, vector<8x24xf32> -> vector<8x24xf32>
      %78 = arith.index_cast %arg15 : i32 to index
      %c0_41 = arith.constant 0 : index
      %c0_42 = arith.constant 0 : index
      %79 = vector.load %arg3[%78, %c0_41, %c0_42] : memref<4x1x24xf32, #tpu.memory_space<vmem>>, vector<1x1x24xf32>
      %80 = vector.shape_cast %79 : vector<1x1x24xf32> to vector<1x24xf32>
      %81 = vector.broadcast %80 : vector<1x24xf32> to vector<8x24xf32>
      %82 = arith.addf %77, %81 : vector<8x24xf32>
      %83 = vector.extract_strided_slice %82 {offsets = [0, 0], sizes = [8, 8], strides = [1, 1]} : vector<8x24xf32> to vector<8x8xf32>
      %84 = vector.shape_cast %83 : vector<8x8xf32> to vector<1x8x8xf32>
      %85 = vector.extract_strided_slice %82 {offsets = [0, 8], sizes = [8, 8], strides = [1, 1]} : vector<8x24xf32> to vector<8x8xf32>
      %86 = vector.shape_cast %85 : vector<8x8xf32> to vector<1x8x8xf32>
      %87 = vector.extract_strided_slice %82 {offsets = [0, 16], sizes = [8, 8], strides = [1, 1]} : vector<8x24xf32> to vector<8x8xf32>
      %88 = vector.shape_cast %87 : vector<8x8xf32> to vector<1x8x8xf32>
      "tpu.trace_start"() <{level = 10 : i32, message = "bld,bsd->bls"}> : () -> ()
      %cst_43 = arith.constant dense<0.000000e+00> : vector<1x8x8xf32>
      %89 = tpu.matmul %84, %86, %cst_43 {dimension_numbers = #tpu.dot_dimension_numbers<[2], [2], [1], [1], [0, 0, 0, 1, 1, 1], [0], [0]>} : vector<1x8x8xf32>, vector<1x8x8xf32>, vector<1x8x8xf32> -> vector<1x8x8xf32>
      "tpu.trace_stop"() : () -> ()
      %cst_44 = arith.constant dense<0xFF800000> : vector<1x8xf32>
      %90 = vector.multi_reduction <maximumf>, %89, %cst_44 [2] : vector<1x8x8xf32> to vector<1x8xf32>
      %91 = vector.shape_cast %90 : vector<1x8xf32> to vector<1x8x1xf32>
      %92 = vector.broadcast %91 : vector<1x8x1xf32> to vector<1x8x8xf32>
      %93 = arith.subf %89, %92 : vector<1x8x8xf32>
      %94 = math.exp %93 : vector<1x8x8xf32>
      %cst_45 = arith.constant dense<0.000000e+00> : vector<1x8xf32>
      %95 = vector.multi_reduction <add>, %94, %cst_45 [2] : vector<1x8x8xf32> to vector<1x8xf32>
      %96 = vector.shape_cast %95 : vector<1x8xf32> to vector<1x8x1xf32>
      "tpu.trace_start"() <{level = 10 : i32, message = "bls,bsd->bld"}> : () -> ()
      %cst_46 = arith.constant dense<0.000000e+00> : vector<1x8x8xf32>
      %97 = tpu.matmul %94, %88, %cst_46 {dimension_numbers = #tpu.dot_dimension_numbers<[2], [1], [1], [2], [0, 0, 0, 1, 1, 2], [0], [0]>} : vector<1x8x8xf32>, vector<1x8x8xf32>, vector<1x8x8xf32> -> vector<1x8x8xf32>
      "tpu.trace_stop"() : () -> ()
      %98 = tpu.reciprocal %96 {approx = true} : vector<1x8x1xf32> -> vector<1x8x1xf32>
      %99 = vector.broadcast %98 : vector<1x8x1xf32> to vector<1x8x8xf32>
      %100 = arith.mulf %97, %99 : vector<1x8x8xf32>
      %101 = vector.shape_cast %100 : vector<1x8x8xf32> to vector<8x8xf32>
      %102 = arith.index_cast %arg15 : i32 to index
      %c0_47 = arith.constant 0 : index
      %c0_48 = arith.constant 0 : index
      %103 = vector.load %arg4[%102, %c0_47, %c0_48] : memref<4x8x32xf32, #tpu.memory_space<vmem>>, vector<1x8x32xf32>
      %104 = vector.shape_cast %103 : vector<1x8x32xf32> to vector<8x32xf32>
      %cst_49 = arith.constant dense<0.000000e+00> : vector<8x32xf32>
      %105 = tpu.matmul %101, %104, %cst_49 {dimension_numbers = #tpu.dot_dimension_numbers<[1], [0], [0], [1], [0, 0, 1, 1], [], []>} : vector<8x8xf32>, vector<8x32xf32>, vector<8x32xf32> -> vector<8x32xf32>
      %106 = arith.addf %arg16, %105 : vector<8x32xf32>
      scf.yield %106 : vector<8x32xf32>
    }
    %c4_i32_4 = arith.constant 4 : i32
    %7 = arith.addf %1, %6 : vector<8x32xf32>
    %cst = arith.constant dense<0.000000e+00> : vector<8xf32>
    %8 = vector.multi_reduction <add>, %7, %cst [1] : vector<8x32xf32> to vector<8xf32>
    %9 = vector.shape_cast %8 : vector<8xf32> to vector<8x1xf32>
    %cst_5 = arith.constant 3.200000e+01 : f32
    %10 = vector.broadcast %cst_5 : f32 to vector<8x1xf32>
    %11 = arith.divf %9, %10 : vector<8x1xf32>
    %12 = vector.broadcast %11 : vector<8x1xf32> to vector<8x32xf32>
    %13 = arith.subf %7, %12 : vector<8x32xf32>
    %14 = arith.mulf %13, %13 : vector<8x32xf32>
    %cst_6 = arith.constant dense<0.000000e+00> : vector<8xf32>
    %15 = vector.multi_reduction <add>, %14, %cst_6 [1] : vector<8x32xf32> to vector<8xf32>
    %16 = vector.shape_cast %15 : vector<8xf32> to vector<8x1xf32>
    %cst_7 = arith.constant 3.200000e+01 : f32
    %17 = vector.broadcast %cst_7 : f32 to vector<8x1xf32>
    %18 = arith.divf %16, %17 : vector<8x1xf32>
    %cst_8 = arith.constant 9.99999974E-6 : f32
    %19 = vector.broadcast %cst_8 : f32 to vector<8x1xf32>
    %20 = arith.addf %18, %19 : vector<8x1xf32>
    %21 = math.rsqrt %20 : vector<8x1xf32>
    %22 = vector.broadcast %21 : vector<8x1xf32> to vector<8x32xf32>
    %23 = arith.mulf %13, %22 : vector<8x32xf32>
    %c0_9 = arith.constant 0 : index
    %c0_10 = arith.constant 0 : index
    %24 = vector.load %arg10[%c0_9, %c0_10] : memref<1x32xf32, #tpu.memory_space<vmem>>, vector<1x32xf32>
    %25 = vector.broadcast %24 : vector<1x32xf32> to vector<8x32xf32>
    %26 = arith.mulf %23, %25 : vector<8x32xf32>
    %c0_11 = arith.constant 0 : index
    %c0_12 = arith.constant 0 : index
    %27 = vector.load %arg11[%c0_11, %c0_12] : memref<1x32xf32, #tpu.memory_space<vmem>>, vector<1x32xf32>
    %28 = vector.broadcast %27 : vector<1x32xf32> to vector<8x32xf32>
    %29 = arith.addf %26, %28 : vector<8x32xf32>
    %c0_13 = arith.constant 0 : index
    %c0_14 = arith.constant 0 : index
    %30 = vector.load %arg9[%c0_13, %c0_14] : memref<1x32xf32, #tpu.memory_space<vmem>>, vector<1x32xf32>
    %31 = vector.shape_cast %30 : vector<1x32xf32> to vector<1x32xf32>
    %32 = vector.broadcast %31 : vector<1x32xf32> to vector<8x32xf32>
    %c0_i32_15 = arith.constant 0 : i32
    %33 = arith.index_cast %c0_i32_15 : i32 to index
    %c0_16 = arith.constant 0 : index
    %c0_17 = arith.constant 0 : index
    %34 = vector.load %arg6[%33, %c0_16, %c0_17] : memref<1x32x128xf32, #tpu.memory_space<vmem>>, vector<1x32x128xf32>
    %35 = vector.shape_cast %34 : vector<1x32x128xf32> to vector<32x128xf32>
    %cst_18 = arith.constant dense<0.000000e+00> : vector<8x128xf32>
    %36 = tpu.matmul %29, %35, %cst_18 {dimension_numbers = #tpu.dot_dimension_numbers<[1], [0], [0], [1], [0, 0, 1, 1], [], []>} : vector<8x32xf32>, vector<32x128xf32>, vector<8x128xf32> -> vector<8x128xf32>
    %37 = arith.index_cast %c0_i32_15 : i32 to index
    %c0_19 = arith.constant 0 : index
    %c0_20 = arith.constant 0 : index
    %38 = vector.load %arg7[%37, %c0_19, %c0_20] : memref<1x1x128xf32, #tpu.memory_space<vmem>>, vector<1x1x128xf32>
    %39 = vector.shape_cast %38 : vector<1x1x128xf32> to vector<1x128xf32>
    %40 = vector.broadcast %39 : vector<1x128xf32> to vector<8x128xf32>
    %41 = arith.addf %36, %40 : vector<8x128xf32>
    %cst_21 = arith.constant 0.000000e+00 : f32
    %42 = vector.broadcast %cst_21 : f32 to vector<8x128xf32>
    %43 = arith.maximumf %41, %42 : vector<8x128xf32>
    %44 = arith.index_cast %c0_i32_15 : i32 to index
    %c0_22 = arith.constant 0 : index
    %c0_23 = arith.constant 0 : index
    %45 = vector.load %arg8[%44, %c0_22, %c0_23] : memref<1x128x32xf32, #tpu.memory_space<vmem>>, vector<1x128x32xf32>
    %46 = vector.shape_cast %45 : vector<1x128x32xf32> to vector<128x32xf32>
    %cst_24 = arith.constant dense<0.000000e+00> : vector<8x32xf32>
    %47 = tpu.matmul %43, %46, %cst_24 {dimension_numbers = #tpu.dot_dimension_numbers<[1], [0], [0], [1], [0, 0, 1, 1], [], []>} : vector<8x128xf32>, vector<128x32xf32>, vector<8x32xf32> -> vector<8x32xf32>
    %48 = arith.addf %32, %47 : vector<8x32xf32>
    %c1_i32_25 = arith.constant 1 : i32
    %49 = arith.addf %29, %48 : vector<8x32xf32>
    %cst_26 = arith.constant dense<0.000000e+00> : vector<8xf32>
    %50 = vector.multi_reduction <add>, %49, %cst_26 [1] : vector<8x32xf32> to vector<8xf32>
    %51 = vector.shape_cast %50 : vector<8xf32> to vector<8x1xf32>
    %cst_27 = arith.constant 3.200000e+01 : f32
    %52 = vector.broadcast %cst_27 : f32 to vector<8x1xf32>
    %53 = arith.divf %51, %52 : vector<8x1xf32>
    %54 = vector.broadcast %53 : vector<8x1xf32> to vector<8x32xf32>
    %55 = arith.subf %49, %54 : vector<8x32xf32>
    %56 = arith.mulf %55, %55 : vector<8x32xf32>
    %cst_28 = arith.constant dense<0.000000e+00> : vector<8xf32>
    %57 = vector.multi_reduction <add>, %56, %cst_28 [1] : vector<8x32xf32> to vector<8xf32>
    %58 = vector.shape_cast %57 : vector<8xf32> to vector<8x1xf32>
    %cst_29 = arith.constant 3.200000e+01 : f32
    %59 = vector.broadcast %cst_29 : f32 to vector<8x1xf32>
    %60 = arith.divf %58, %59 : vector<8x1xf32>
    %cst_30 = arith.constant 9.99999974E-6 : f32
    %61 = vector.broadcast %cst_30 : f32 to vector<8x1xf32>
    %62 = arith.addf %60, %61 : vector<8x1xf32>
    %63 = math.rsqrt %62 : vector<8x1xf32>
    %64 = vector.broadcast %63 : vector<8x1xf32> to vector<8x32xf32>
    %65 = arith.mulf %55, %64 : vector<8x32xf32>
    %c0_31 = arith.constant 0 : index
    %c0_32 = arith.constant 0 : index
    %66 = vector.load %arg12[%c0_31, %c0_32] : memref<1x32xf32, #tpu.memory_space<vmem>>, vector<1x32xf32>
    %67 = vector.broadcast %66 : vector<1x32xf32> to vector<8x32xf32>
    %68 = arith.mulf %65, %67 : vector<8x32xf32>
    %c0_33 = arith.constant 0 : index
    %c0_34 = arith.constant 0 : index
    %69 = vector.load %arg13[%c0_33, %c0_34] : memref<1x32xf32, #tpu.memory_space<vmem>>, vector<1x32xf32>
    %70 = vector.broadcast %69 : vector<1x32xf32> to vector<8x32xf32>
    %71 = arith.addf %68, %70 : vector<8x32xf32>
    %72 = vector.shape_cast %71 : vector<8x32xf32> to vector<1x8x32xf32>
    %c0_35 = arith.constant 0 : index
    %c0_36 = arith.constant 0 : index
    %c0_37 = arith.constant 0 : index
    %73 = vector.load %arg14[%c0_35, %c0_36, %c0_37] : memref<1x8x32xf32, #tpu.memory_space<vmem>>, vector<1x8x32xf32>
    tpu.vector_store %arg14[%c0_35, %c0_36, %c0_37], %72 {strides = array<i32>} : memref<1x8x32xf32, #tpu.memory_space<vmem>>, vector<1x8x32xf32>,
    return
  }
  func.func @transform_0(%arg0: i32) -> (i32, i32, i32) {
    %c0_i32 = arith.constant 0 : i32
    %c0_i32_0 = arith.constant 0 : i32
    %c0_i32_1 = arith.constant 0 : i32
    return %arg0, %c0_i32, %c0_i32_0 : i32, i32, i32
  }
  func.func @transform_1(%arg0: i32) -> (i32, i32, i32) {
    %c0_i32 = arith.constant 0 : i32
    %c0_i32_0 = arith.constant 0 : i32
    %c0_i32_1 = arith.constant 0 : i32
    %c0_i32_2 = arith.constant 0 : i32
    return %c0_i32, %c0_i32_0, %c0_i32_1 : i32, i32, i32
  }
  func.func @transform_2(%arg0: i32) -> (i32, i32, i32) {
    %c0_i32 = arith.constant 0 : i32
    %c0_i32_0 = arith.constant 0 : i32
    %c0_i32_1 = arith.constant 0 : i32
    %c0_i32_2 = arith.constant 0 : i32
    return %c0_i32, %c0_i32_0, %c0_i32_1 : i32, i32, i32
  }
  func.func @transform_3(%arg0: i32) -> (i32, i32, i32) {
    %c0_i32 = arith.constant 0 : i32
    %c0_i32_0 = arith.constant 0 : i32
    %c0_i32_1 = arith.constant 0 : i32
    %c0_i32_2 = arith.constant 0 : i32
    return %c0_i32, %c0_i32_0, %c0_i32_1 : i32, i32, i32
  }
  func.func @transform_4(%arg0: i32) -> (i32, i32) {
    %c0_i32 = arith.constant 0 : i32
    %c0_i32_0 = arith.constant 0 : i32
    %c0_i32_1 = arith.constant 0 : i32
    return %c0_i32, %c0_i32_0 : i32, i32
  }
  func.func @transform_5(%arg0: i32) -> (i32, i32, i32) {
    %c0_i32 = arith.constant 0 : i32
    %c0_i32_0 = arith.constant 0 : i32
    %c0_i32_1 = arith.constant 0 : i32
    %c0_i32_2 = arith.constant 0 : i32
    return %c0_i32, %c0_i32_0, %c0_i32_1 : i32, i32, i32
  }
  func.func @transform_6(%arg0: i32) -> (i32, i32, i32) {
    %c0_i32 = arith.constant 0 : i32
    %c0_i32_0 = arith.constant 0 : i32
    %c0_i32_1 = arith.constant 0 : i32
    %c0_i32_2 = arith.constant 0 : i32
    return %c0_i32, %c0_i32_0, %c0_i32_1 : i32, i32, i32
  }
  func.func @transform_7(%arg0: i32) -> (i32, i32, i32) {
    %c0_i32 = arith.constant 0 : i32
    %c0_i32_0 = arith.constant 0 : i32
    %c0_i32_1 = arith.constant 0 : i32
    %c0_i32_2 = arith.constant 0 : i32
    return %c0_i32, %c0_i32_0, %c0_i32_1 : i32, i32, i32
  }
  func.func @transform_8(%arg0: i32) -> (i32, i32) {
    %c0_i32 = arith.constant 0 : i32
    %c0_i32_0 = arith.constant 0 : i32
    %c0_i32_1 = arith.constant 0 : i32
    return %c0_i32, %c0_i32_0 : i32, i32
  }
  func.func @transform_9(%arg0: i32) -> (i32, i32) {
    %c0_i32 = arith.constant 0 : i32
    %c0_i32_0 = arith.constant 0 : i32
    %c0_i32_1 = arith.constant 0 : i32
    return %c0_i32, %c0_i32_0 : i32, i32
  }
  func.func @transform_10(%arg0: i32) -> (i32, i32) {
    %c0_i32 = arith.constant 0 : i32
    %c0_i32_0 = arith.constant 0 : i32
    %c0_i32_1 = arith.constant 0 : i32
    return %c0_i32, %c0_i32_0 : i32, i32
  }
  func.func @transform_11(%arg0: i32) -> (i32, i32) {
    %c0_i32 = arith.constant 0 : i32
    %c0_i32_0 = arith.constant 0 : i32
    %c0_i32_1 = arith.constant 0 : i32
    return %c0_i32, %c0_i32_0 : i32, i32
  }
  func.func @transform_12(%arg0: i32) -> (i32, i32) {
    %c0_i32 = arith.constant 0 : i32
    %c0_i32_0 = arith.constant 0 : i32
    %c0_i32_1 = arith.constant 0 : i32
    return %c0_i32, %c0_i32_0 : i32, i32
  }
  func.func @transform_13(%arg0: i32) -> (i32, i32, i32) {
    %c0_i32 = arith.constant 0 : i32
    %c0_i32_0 = arith.constant 0 : i32
    %c0_i32_1 = arith.constant 0 : i32
    return %arg0, %c0_i32, %c0_i32_0 : i32, i32, i32
  }
}

</mosaic_0001>

<llo_original>
// kernel: tpu_custom_call.1
$region0: #{tpu_custom_call.1}
  #allocation0 [shape = 'u32[]', space=smem, size = 0x4, offset = 0x4, fixed_abs, tag = 'smem constant byte address 0x4 - core index']
  #allocation1 [shape = 'u32[144,128]{1,0:T(1,128)}', space=vmem, size = 0x12000, scoped, tag = 'internal scratch']
  %s0 = inlined_call_operand.vmem [shape: f32[2,8,32], index: 0, kind: input, shape index: {}]
  %s1 = inlined_call_operand.vmem [shape: f32[4,32,24], index: 1, kind: input, shape index: {}]
  %s2 = inlined_call_operand.vmem [shape: f32[4,1,24], index: 2, kind: input, shape index: {}]
  %s3 = inlined_call_operand.vmem [shape: f32[4,8,32], index: 3, kind: input, shape index: {}]
  %s4 = inlined_call_operand.vmem [shape: f32[1,32], index: 4, kind: input, shape index: {}]
  %s5 = inlined_call_operand.vmem [shape: f32[1,32,128], index: 5, kind: input, shape index: {}]
  %s6 = inlined_call_operand.vmem [shape: f32[1,1,128], index: 6, kind: input, shape index: {}]
  %s7 = inlined_call_operand.vmem [shape: f32[1,128,32], index: 7, kind: input, shape index: {}]
  %s8 = inlined_call_operand.vmem [shape: f32[1,32], index: 8, kind: input, shape index: {}]
  %s9 = inlined_call_operand.vmem [shape: f32[1,32], index: 9, kind: input, shape index: {}]
  %s10 = inlined_call_operand.vmem [shape: f32[1,32], index: 10, kind: input, shape index: {}]
  %s11 = inlined_call_operand.vmem [shape: f32[1,32], index: 11, kind: input, shape index: {}]
  %s12 = inlined_call_operand.vmem [shape: f32[1,32], index: 12, kind: input, shape index: {}]
  %s13 = inlined_call_operand.hbm [shape: f32[2,8,32], index: 13, kind: output, shape index: {}]
  %s14 = sld [smem:[#allocation0]]
  $region92: #{tpu_custom_call.1} parent=0
    _
  %s16 = ssub.s32 1, %s14
  %s17 = scalar_select 0, %s16, %s14
  $region1: #{tpu_custom_call.1} parent=0
    #allocation2 [shape = 'u8[8192]{0}', space=vmem, size = 0x2000, scoped, tag = 'output window, operand 0']
    #allocation3 [shape = 's32[2]{0}', space=sflag, size = 0x8, scoped, tag = 'scoped memory for tpu_custom_call.1']
    %18 = vsyncpa [#allocation3], 0
    %s19 = scalar_lea.sflag [#allocation3], 1
    %20 = vsyncpa %s19, 0
    loop: start=0, step=1, limit=4
    $region2: #{tpu_custom_call.1} parent=1 // loop_pre_header
      _
    $region3: #{tpu_custom_call.1} parent=1 // loop_header
      %s22 = sphi 0, %s26
      %p23 = scmp.ge.s32.totalorder %s22, 4
      %s32 = sphi 0, %s34
      %s35 = sphi 0, %s32
      %s36 = sphi 0, %s35
      %s52 = sphi 0, %s36
      %s56 = sphi 0, %s56
      %s58 = sphi 0, %s56
      %s59 = sphi 0, %s58
      %s73 = sphi 0, %s59
      %s77 = sphi 0, %s77
      %s79 = sphi 0, %s77
      %s80 = sphi 0, %s79
      %s94 = sphi 0, %s80
      %s98 = sphi 0, %s98
      %s100 = sphi 0, %s98
      %s101 = sphi 0, %s100
      %s115 = sphi 0, %s101
      %s119 = sphi 0, %s119
      %s121 = sphi 0, %s119
      %s122 = sphi 0, %s121
      %s136 = sphi 0, %s122
      %s140 = sphi 0, %s140
      %s142 = sphi 0, %s140
      %s143 = sphi 0, %s142
      %s157 = sphi 0, %s143
      %s161 = sphi 0, %s161
      %s163 = sphi 0, %s161
      %s164 = sphi 0, %s163
      %s178 = sphi 0, %s164
      %s182 = sphi 0, %s182
      %s184 = sphi 0, %s182
      %s185 = sphi 0, %s184
      %s199 = sphi 0, %s185
      %s203 = sphi 0, %s203
      %s205 = sphi 0, %s203
      %s206 = sphi 0, %s205
      %s220 = sphi 0, %s206
      %s224 = sphi 0, %s224
      %s226 = sphi 0, %s224
      %s227 = sphi 0, %s226
      %s241 = sphi 0, %s227
      %s245 = sphi 0, %s245
      %s247 = sphi 0, %s245
      %s248 = sphi 0, %s247
      %s262 = sphi 0, %s248
      %s266 = sphi 0, %s266
      %s268 = sphi 0, %s266
      %s269 = sphi 0, %s268
      %s283 = sphi 0, %s269
      %s287 = sphi 0, %s287
      %s289 = sphi 0, %s287
      %s290 = sphi 0, %s289
      %s304 = sphi 0, %s290
      %s310 = sphi 0, %s312
      %s313 = sphi 0, %s310
      %s314 = sphi 0, %s313
      %s330 = sphi 0, %s314
    $region4: #{tpu_custom_call.1} parent=1 // loop_header_branch
      %25 = sbr.rel (%p23) target = $region8
    $region5: #{tpu_custom_call.1} parent=1 // loop_body
      %s27 = ssub.s32 %s22, 1
      %s28 = ssub.s32 %s22, 2
      %s29 = sadd.s32 %s22, 1
      %s30 = ssub.s32 %s22, %s29
      %p31 = scmp.eq.s32.totalorder %s30, 0
      %s33 = sadd.s32 %s32, 1
      %s34 = scalar_select %p31, %s32, %s33
      %p37 = pneg %p31
      %p38 = scmp.eq.s32.totalorder %s22, 1
      %p39 = por %p37, %p38
      %p40 = scmp.ne.s32.totalorder %s32, %s35
      %p41 = scmp.eq.s32.totalorder %s22, 0
      %p42 = por %p40, %p41
      %p43 = scmp.ne.s32.totalorder %s32, %s35
      %p44 = scmp.eq.s32.totalorder %s27, 1
      %p45 = por %p43, %p44
      %p46 = scmp.ne.s32.totalorder %s35, %s36
      %p47 = scmp.eq.s32.totalorder %s27, 0
      %p48 = por %p46, %p47
      %p49 = scmp.ne.s32.totalorder %s35, %s36
      %p50 = scmp.eq.s32.totalorder %s28, 1
      %p51 = por %p49, %p50
      %p53 = scmp.ne.s32.totalorder %s36, %s52
      %p54 = scmp.eq.s32.totalorder %s28, 0
      %p55 = por %p53, %p54
      %s57 = sadd.s32 %s56, 1
      %p60 = scmp.eq.s32.totalorder %s22, 1
      %p61 = scmp.ne.s32.totalorder %s56, %s58
      %p62 = scmp.eq.s32.totalorder %s22, 0
      %p63 = por %p61, %p62
      %p64 = scmp.ne.s32.totalorder %s56, %s58
      %p65 = scmp.eq.s32.totalorder %s27, 1
      %p66 = por %p64, %p65
      %p67 = scmp.ne.s32.totalorder %s58, %s59
      %p68 = scmp.eq.s32.totalorder %s27, 0
      %p69 = por %p67, %p68
      %p70 = scmp.ne.s32.totalorder %s58, %s59
      %p71 = scmp.eq.s32.totalorder %s28, 1
      %p72 = por %p70, %p71
      %p74 = scmp.ne.s32.totalorder %s59, %s73
      %p75 = scmp.eq.s32.totalorder %s28, 0
      %p76 = por %p74, %p75
      %s78 = sadd.s32 %s77, 1
      %p81 = scmp.eq.s32.totalorder %s22, 1
      %p82 = scmp.ne.s32.totalorder %s77, %s79
      %p83 = scmp.eq.s32.totalorder %s22, 0
      %p84 = por %p82, %p83
      %p85 = scmp.ne.s32.totalorder %s77, %s79
      %p86 = scmp.eq.s32.totalorder %s27, 1
      %p87 = por %p85, %p86
      %p88 = scmp.ne.s32.totalorder %s79, %s80
      %p89 = scmp.eq.s32.totalorder %s27, 0
      %p90 = por %p88, %p89
      %p91 = scmp.ne.s32.totalorder %s79, %s80
      %p92 = scmp.eq.s32.totalorder %s28, 1
      %p93 = por %p91, %p92
      %p95 = scmp.ne.s32.totalorder %s80, %s94
      %p96 = scmp.eq.s32.totalorder %s28, 0
      %p97 = por %p95, %p96
      %s99 = sadd.s32 %s98, 1
      %p102 = scmp.eq.s32.totalorder %s22, 1
      %p103 = scmp.ne.s32.totalorder %s98, %s100
      %p104 = scmp.eq.s32.totalorder %s22, 0
      %p105 = por %p103, %p104
      %p106 = scmp.ne.s32.totalorder %s98, %s100
      %p107 = scmp.eq.s32.totalorder %s27, 1
      %p108 = por %p106, %p107
      %p109 = scmp.ne.s32.totalorder %s100, %s101
      %p110 = scmp.eq.s32.totalorder %s27, 0
      %p111 = por %p109, %p110
      %p112 = scmp.ne.s32.totalorder %s100, %s101
      %p113 = scmp.eq.s32.totalorder %s28, 1
      %p114 = por %p112, %p113
      %p116 = scmp.ne.s32.totalorder %s101, %s115
      %p117 = scmp.eq.s32.totalorder %s28, 0
      %p118 = por %p116, %p117
      %s120 = sadd.s32 %s119, 1
      %p123 = scmp.eq.s32.totalorder %s22, 1
      %p124 = scmp.ne.s32.totalorder %s119, %s121
      %p125 = scmp.eq.s32.totalorder %s22, 0
      %p126 = por %p124, %p125
      %p127 = scmp.ne.s32.totalorder %s119, %s121
      %p128 = scmp.eq.s32.totalorder %s27, 1
      %p129 = por %p127, %p128
      %p130 = scmp.ne.s32.totalorder %s121, %s122
      %p131 = scmp.eq.s32.totalorder %s27, 0
      %p132 = por %p130, %p131
      %p133 = scmp.ne.s32.totalorder %s121, %s122
      %p134 = scmp.eq.s32.totalorder %s28, 1
      %p135 = por %p133, %p134
      %p137 = scmp.ne.s32.totalorder %s122, %s136
      %p138 = scmp.eq.s32.totalorder %s28, 0
      %p139 = por %p137, %p138
      %s141 = sadd.s32 %s140, 1
      %p144 = scmp.eq.s32.totalorder %s22, 1
      %p145 = scmp.ne.s32.totalorder %s140, %s142
      %p146 = scmp.eq.s32.totalorder %s22, 0
      %p147 = por %p145, %p146
      %p148 = scmp.ne.s32.totalorder %s140, %s142
      %p149 = scmp.eq.s32.totalorder %s27, 1
      %p150 = por %p148, %p149
      %p151 = scmp.ne.s32.totalorder %s142, %s143
      %p152 = scmp.eq.s32.totalorder %s27, 0
      %p153 = por %p151, %p152
      %p154 = scmp.ne.s32.totalorder %s142, %s143
      %p155 = scmp.eq.s32.totalorder %s28, 1
      %p156 = por %p154, %p155
      %p158 = scmp.ne.s32.totalorder %s143, %s157
      %p159 = scmp.eq.s32.totalorder %s28, 0
      %p160 = por %p158, %p159
      %s162 = sadd.s32 %s161, 1
      %p165 = scmp.eq.s32.totalorder %s22, 1
      %p166 = scmp.ne.s32.totalorder %s161, %s163
      %p167 = scmp.eq.s32.totalorder %s22, 0
      %p168 = por %p166, %p167
      %p169 = scmp.ne.s32.totalorder %s161, %s163
      %p170 = scmp.eq.s32.totalorder %s27, 1
      %p171 = por %p169, %p170
      %p172 = scmp.ne.s32.totalorder %s163, %s164
      %p173 = scmp.eq.s32.totalorder %s27, 0
      %p174 = por %p172, %p173
      %p175 = scmp.ne.s32.totalorder %s163, %s164
      %p176 = scmp.eq.s32.totalorder %s28, 1
      %p177 = por %p175, %p176
      %p179 = scmp.ne.s32.totalorder %s164, %s178
      %p180 = scmp.eq.s32.totalorder %s28, 0
      %p181 = por %p179, %p180
      %s183 = sadd.s32 %s182, 1
      %p186 = scmp.eq.s32.totalorder %s22, 1
      %p187 = scmp.ne.s32.totalorder %s182, %s184
      %p188 = scmp.eq.s32.totalorder %s22, 0
      %p189 = por %p187, %p188
      %p190 = scmp.ne.s32.totalorder %s182, %s184
      %p191 = scmp.eq.s32.totalorder %s27, 1
      %p192 = por %p190, %p191
      %p193 = scmp.ne.s32.totalorder %s184, %s185
      %p194 = scmp.eq.s32.totalorder %s27, 0
      %p195 = por %p193, %p194
      %p196 = scmp.ne.s32.totalorder %s184, %s185
      %p197 = scmp.eq.s32.totalorder %s28, 1
      %p198 = por %p196, %p197
      %p200 = scmp.ne.s32.totalorder %s185, %s199
      %p201 = scmp.eq.s32.totalorder %s28, 0
      %p202 = por %p200, %p201
      %s204 = sadd.s32 %s203, 1
      %p207 = scmp.eq.s32.totalorder %s22, 1
      %p208 = scmp.ne.s32.totalorder %s203, %s205
      %p209 = scmp.eq.s32.totalorder %s22, 0
      %p210 = por %p208, %p209
      %p211 = scmp.ne.s32.totalorder %s203, %s205
      %p212 = scmp.eq.s32.totalorder %s27, 1
      %p213 = por %p211, %p212
      %p214 = scmp.ne.s32.totalorder %s205, %s206
      %p215 = scmp.eq.s32.totalorder %s27, 0
      %p216 = por %p214, %p215
      %p217 = scmp.ne.s32.totalorder %s205, %s206
      %p218 = scmp.eq.s32.totalorder %s28, 1
      %p219 = por %p217, %p218
      %p221 = scmp.ne.s32.totalorder %s206, %s220
      %p222 = scmp.eq.s32.totalorder %s28, 0
      %p223 = por %p221, %p222
      %s225 = sadd.s32 %s224, 1
      %p228 = scmp.eq.s32.totalorder %s22, 1
      %p229 = scmp.ne.s32.totalorder %s224, %s226
      %p230 = scmp.eq.s32.totalorder %s22, 0
      %p231 = por %p229, %p230
      %p232 = scmp.ne.s32.totalorder %s224, %s226
      %p233 = scmp.eq.s32.totalorder %s27, 1
      %p234 = por %p232, %p233
      %p235 = scmp.ne.s32.totalorder %s226, %s227
      %p236 = scmp.eq.s32.totalorder %s27, 0
      %p237 = por %p235, %p236
      %p238 = scmp.ne.s32.totalorder %s226, %s227
      %p239 = scmp.eq.s32.totalorder %s28, 1
      %p240 = por %p238, %p239
      %p242 = scmp.ne.s32.totalorder %s227, %s241
      %p243 = scmp.eq.s32.totalorder %s28, 0
      %p244 = por %p242, %p243
      %s246 = sadd.s32 %s245, 1
      %p249 = scmp.eq.s32.totalorder %s22, 1
      %p250 = scmp.ne.s32.totalorder %s245, %s247
      %p251 = scmp.eq.s32.totalorder %s22, 0
      %p252 = por %p250, %p251
      %p253 = scmp.ne.s32.totalorder %s245, %s247
      %p254 = scmp.eq.s32.totalorder %s27, 1
      %p255 = por %p253, %p254
      %p256 = scmp.ne.s32.totalorder %s247, %s248
      %p257 = scmp.eq.s32.totalorder %s27, 0
      %p258 = por %p256, %p257
      %p259 = scmp.ne.s32.totalorder %s247, %s248
      %p260 = scmp.eq.s32.totalorder %s28, 1
      %p261 = por %p259, %p260
      %p263 = scmp.ne.s32.totalorder %s248, %s262
      %p264 = scmp.eq.s32.totalorder %s28, 0
      %p265 = por %p263, %p264
      %s267 = sadd.s32 %s266, 1
      %p270 = scmp.eq.s32.totalorder %s22, 1
      %p271 = scmp.ne.s32.totalorder %s266, %s268
      %p272 = scmp.eq.s32.totalorder %s22, 0
      %p273 = por %p271, %p272
      %p274 = scmp.ne.s32.totalorder %s266, %s268
      %p275 = scmp.eq.s32.totalorder %s27, 1
      %p276 = por %p274, %p275
      %p277 = scmp.ne.s32.totalorder %s268, %s269
      %p278 = scmp.eq.s32.totalorder %s27, 0
      %p279 = por %p277, %p278
      %p280 = scmp.ne.s32.totalorder %s268, %s269
      %p281 = scmp.eq.s32.totalorder %s28, 1
      %p282 = por %p280, %p281
      %p284 = scmp.ne.s32.totalorder %s269, %s283
      %p285 = scmp.eq.s32.totalorder %s28, 0
      %p286 = por %p284, %p285
      %s288 = sadd.s32 %s287, 1
      %p291 = scmp.eq.s32.totalorder %s22, 1
      %p292 = scmp.ne.s32.totalorder %s287, %s289
      %p293 = scmp.eq.s32.totalorder %s22, 0
      %p294 = por %p292, %p293
      %p295 = scmp.ne.s32.totalorder %s287, %s289
      %p296 = scmp.eq.s32.totalorder %s27, 1
      %p297 = por %p295, %p296
      %p298 = scmp.ne.s32.totalorder %s289, %s290
      %p299 = scmp.eq.s32.totalorder %s27, 0
      %p300 = por %p298, %p299
      %p301 = scmp.ne.s32.totalorder %s289, %s290
      %p302 = scmp.eq.s32.totalorder %s28, 1
      %p303 = por %p301, %p302
      %p305 = scmp.ne.s32.totalorder %s290, %s304
      %p306 = scmp.eq.s32.totalorder %s28, 0
      %p307 = por %p305, %p306
      %s308 = ssub.s32 %s22, %s29
      %p309 = scmp.eq.s32.totalorder %s308, 0
      %s311 = sadd.s32 %s310, 1
      %s312 = scalar_select %p309, %s310, %s311
      %p315 = pneg %p309
      %p316 = scmp.eq.s32.totalorder %s22, 1
      %p317 = por %p315, %p316
      %p318 = scmp.ne.s32.totalorder %s310, %s313
      %p319 = scmp.eq.s32.totalorder %s22, 0
      %p320 = por %p318, %p319
      %p321 = scmp.ne.s32.totalorder %s310, %s313
      %p322 = scmp.eq.s32.totalorder %s27, 1
      %p323 = por %p321, %p322
      %p324 = scmp.ne.s32.totalorder %s313, %s314
      %p325 = scmp.eq.s32.totalorder %s27, 0
      %p326 = por %p324, %p325
      %p327 = scmp.ne.s32.totalorder %s313, %s314
      %p328 = scmp.eq.s32.totalorder %s28, 1
      %p329 = por %p327, %p328
      %p331 = scmp.ne.s32.totalorder %s314, %s330
      %p332 = scmp.eq.s32.totalorder %s28, 0
      %p333 = por %p331, %p332
      %p334 = scmp.le.s32.totalorder 1, %s22
      %p335 = scmp.lt.s32.totalorder %s22, 3
      %p336 = pnand %p334, %p335
      %p337 = pneg %p336
      // Predicated region
      $region9: #{tpu_custom_call.1} parent=5 // pred_check
        _
      $region10: #{tpu_custom_call.1} parent=5 // pred_check_branch
        %339 = sbr.rel (%p336) target = $region12
      $region11: #{tpu_custom_call.1} parent=5 // pred_region
        %s340 = ssub.s32 %s22, 1
        // Predicated region
        $region13: #{tpu_custom_call.1} parent=11 // pred_check
          %p341 = pneg %p69
        $region14: #{tpu_custom_call.1} parent=11 // pred_check_branch
          %343 = sbr.rel (%p341) target = $region16
        $region15: #{tpu_custom_call.1} parent=11 // pred_region
          _
        $region16: #{tpu_custom_call.1} parent=11 // pred_fallthru
          _
        // Predicated region
        $region17: #{tpu_custom_call.1} parent=11 // pred_check
          %p344 = pneg %p90
        $region18: #{tpu_custom_call.1} parent=11 // pred_check_branch
          %346 = sbr.rel (%p344) target = $region20
        $region19: #{tpu_custom_call.1} parent=11 // pred_region
          _
        $region20: #{tpu_custom_call.1} parent=11 // pred_fallthru
          _
        // Predicated region
        $region21: #{tpu_custom_call.1} parent=11 // pred_check
          %p347 = pneg %p111
        $region22: #{tpu_custom_call.1} parent=11 // pred_check_branch
          %349 = sbr.rel (%p347) target = $region24
        $region23: #{tpu_custom_call.1} parent=11 // pred_region
          _
        $region24: #{tpu_custom_call.1} parent=11 // pred_fallthru
          _
        // Predicated region
        $region25: #{tpu_custom_call.1} parent=11 // pred_check
          %p350 = pneg %p132
        $region26: #{tpu_custom_call.1} parent=11 // pred_check_branch
          %352 = sbr.rel (%p350) target = $region28
        $region27: #{tpu_custom_call.1} parent=11 // pred_region
          _
        $region28: #{tpu_custom_call.1} parent=11 // pred_fallthru
          _
        // Predicated region
        $region29: #{tpu_custom_call.1} parent=11 // pred_check
          %p353 = pneg %p153
        $region30: #{tpu_custom_call.1} parent=11 // pred_check_branch
          %355 = sbr.rel (%p353) target = $region32
        $region31: #{tpu_custom_call.1} parent=11 // pred_region
          _
        $region32: #{tpu_custom_call.1} parent=11 // pred_fallthru
          _
        // Predicated region
        $region33: #{tpu_custom_call.1} parent=11 // pred_check
          %p356 = pneg %p174
        $region34: #{tpu_custom_call.1} parent=11 // pred_check_branch
          %358 = sbr.rel (%p356) target = $region36
        $region35: #{tpu_custom_call.1} parent=11 // pred_region
          _
        $region36: #{tpu_custom_call.1} parent=11 // pred_fallthru
          _
        // Predicated region
        $region37: #{tpu_custom_call.1} parent=11 // pred_check
          %p359 = pneg %p195
        $region38: #{tpu_custom_call.1} parent=11 // pred_check_branch
          %361 = sbr.rel (%p359) target = $region40
        $region39: #{tpu_custom_call.1} parent=11 // pred_region
          _
        $region40: #{tpu_custom_call.1} parent=11 // pred_fallthru
          _
        // Predicated region
        $region41: #{tpu_custom_call.1} parent=11 // pred_check
          %p362 = pneg %p216
        $region42: #{tpu_custom_call.1} parent=11 // pred_check_branch
          %364 = sbr.rel (%p362) target = $region44
        $region43: #{tpu_custom_call.1} parent=11 // pred_region
          _
        $region44: #{tpu_custom_call.1} parent=11 // pred_fallthru
          _
        // Predicated region
        $region45: #{tpu_custom_call.1} parent=11 // pred_check
          %p365 = pneg %p237
        $region46: #{tpu_custom_call.1} parent=11 // pred_check_branch
          %367 = sbr.rel (%p365) target = $region48
        $region47: #{tpu_custom_call.1} parent=11 // pred_region
          _
        $region48: #{tpu_custom_call.1} parent=11 // pred_fallthru
          _
        // Predicated region
        $region49: #{tpu_custom_call.1} parent=11 // pred_check
          %p368 = pneg %p258
        $region50: #{tpu_custom_call.1} parent=11 // pred_check_branch
          %370 = sbr.rel (%p368) target = $region52
        $region51: #{tpu_custom_call.1} parent=11 // pred_region
          _
        $region52: #{tpu_custom_call.1} parent=11 // pred_fallthru
          _
        // Predicated region
        $region53: #{tpu_custom_call.1} parent=11 // pred_check
          %p371 = pneg %p279
        $region54: #{tpu_custom_call.1} parent=11 // pred_check_branch
          %373 = sbr.rel (%p371) target = $region56
        $region55: #{tpu_custom_call.1} parent=11 // pred_region
          _
        $region56: #{tpu_custom_call.1} parent=11 // pred_fallthru
          _
        // Predicated region
        $region57: #{tpu_custom_call.1} parent=11 // pred_check
          %p374 = pneg %p300
        $region58: #{tpu_custom_call.1} parent=11 // pred_check_branch
          %376 = sbr.rel (%p374) target = $region60
        $region59: #{tpu_custom_call.1} parent=11 // pred_region
          _
        $region60: #{tpu_custom_call.1} parent=11 // pred_fallthru
          _
      $region12: #{tpu_custom_call.1} parent=5 // pred_fallthru
        _
      %p377 = scmp.lt.s32.totalorder %s22, 2
      // Predicated region
      $region61: #{tpu_custom_call.1} parent=5 // pred_check
        %p378 = pneg %p377
      $region62: #{tpu_custom_call.1} parent=5 // pred_check_branch
        %380 = sbr.rel (%p378) target = $region64
      $region63: #{tpu_custom_call.1} parent=5 // pred_region
        // Predicated region
        $region65: #{tpu_custom_call.1} parent=63 // pred_check
          %p381 = pneg %p42
        $region66: #{tpu_custom_call.1} parent=63 // pred_check_branch
          %383 = sbr.rel (%p381) target = $region68
        $region67: #{tpu_custom_call.1} parent=63 // pred_region
          %p384 = scmp.lt.s32.totalorder %s22, 1
          %s385 = scalar_select %p384, %s22, 1
          %s386 = smul.addr %s385, 8
          %s387 = scalar_lea.vmem %s0, %s386
        $region68: #{tpu_custom_call.1} parent=63 // pred_fallthru
          _
      $region64: #{tpu_custom_call.1} parent=5 // pred_fallthru
        _
      %p388 = scmp.le.s32.totalorder 1, %s22
      %p389 = scmp.lt.s32.totalorder %s22, 3
      %p390 = pnand %p388, %p389
      %p391 = pneg %p390
      // Predicated region
      $region69: #{tpu_custom_call.1} parent=5 // pred_check
        _
      $region70: #{tpu_custom_call.1} parent=5 // pred_check_branch
        %393 = sbr.rel (%p390) target = $region72
      $region71: #{tpu_custom_call.1} parent=5 // pred_region
        %s394 = ssub.s32 %s22, 1
        %p395 = scmp.lt.s32.totalorder %s27, 1
        %s396 = scalar_select %p395, %s27, 1
        %s397 = smul.addr %s396, 8
        %s398 = scalar_lea.vmem %s0, %s397
        %p399 = pneg %p48
        %p400 = pneg %p45
        %p401 = pneg %p69
        %p402 = pneg %p66
        %p403 = pneg %p90
        %p404 = pneg %p87
        %p405 = pneg %p111
        %p406 = pneg %p108
        %p407 = pneg %p132
        %p408 = pneg %p129
        %p409 = pneg %p153
        %p410 = pneg %p150
        %p411 = pneg %p174
        %p412 = pneg %p171
        %p413 = pneg %p195
        %p414 = pneg %p192
        %p415 = pneg %p216
        %p416 = pneg %p213
        %p417 = pneg %p237
        %p418 = pneg %p234
        %p419 = pneg %p258
        %p420 = pneg %p255
        %p421 = pneg %p279
        %p422 = pneg %p276
        %p423 = pneg %p300
        %p424 = pneg %p297
        %p425 = pneg %p326
        %p426 = pneg %p323
        %s427 = sand.u32 %s313, 1
        %s428 = scalar_lea.sflag [#allocation3], %s427
        %s429 = sand.u32 %s313, 1
        %s430 = smul.addr %s429, 8
        %s431 = scalar_lea.vmem [#allocation2], %s430
        %p432 = scmp.lt.s32.totalorder %s27, 1
        %s433 = scalar_select %p432, %s27, 1
        %s434 = smul.addr %s433, 8
        %s435 = scalar_lea.vmem %s0, %s434
        %v436 = vld [vmem:[%s435] sm:$0xff]
        %v437 = vld [vmem:[%s4] sm:$0x1]
        %v439 = vlaneseq
        %v440 = vshrl.u32 %v439, 7
        %v441 = vsub.s32 0, %v440
        %v442 = vrot.slane %v437, %v441
        loop: start=0, step=1, limit=4
        $region73: #{tpu_custom_call.1} parent=71 // loop_pre_header
          _
        $region74: #{tpu_custom_call.1} parent=71 // loop_header
          %s445 = sphi 0, %s449
          %p446 = scmp.ge.s32.totalorder %s445, 4
          %v450 = vphi %v442, %v780
        $region75: #{tpu_custom_call.1} parent=71 // loop_header_branch
          %448 = sbr.rel (%p446) target = $region79
        $region76: #{tpu_custom_call.1} parent=71 // loop_body
          %s451 = smul.u32 %s445, 32
          %s452 = scalar_lea.vmem %s1, %s451
          %v453 = vld [vmem:[%s452] sm:$0xff]
          %v454 = vld [vmem:[%s452 + $0x8] sm:$0xff]
          %v455 = vld [vmem:[%s452 + $0x10] sm:$0xff]
          %v456 = vld [vmem:[%s452 + $0x18] sm:$0xff]
          %s457 = scalar_lea.vmem %s2, %s445
          %v458 = vld [vmem:[%s457] sm:$0x1]
          %v460 = vlaneseq
          %v461 = vshrl.u32 %v460, 7
          %v462 = vsub.s32 0, %v461
          %v463 = vrot.slane %v458, %v462
          %vm465 = vcmask 261120
          %v467 = vsel %vm465, %v436, 0
          %469 = vmatprep.subr.mxu0 0.0
          %470 = vmatpush1.msra.mxu0 %v453
          %471 = vmatprep.subr.mxu0 0.0
          %472 = vmatpush1.msra.mxu0 %v454
          %473 = vmatprep.subr.mxu0 0.0
          %474 = vmatpush1.msra.mxu0 %v455
          %475 = vmatprep.subr.mxu0 0.0
          %476 = vmatpush1.msra.mxu0 %v456
          %477 = vmatprep.subr.mxu0 0.0
          %478 = vmatpush1.msra.mxu0 0.0
          %479 = vmatprep.subr.mxu0 0.0
          %480 = vmatpush1.msra.mxu0 0.0
          %481 = vmatprep.subr.mxu0 0.0
          %482 = vmatpush1.msra.mxu0 0.0
          %483 = vmatprep.subr.mxu0 0.0
          %484 = vmatpush1.msra.mxu0 0.0
          %485 = vmatprep.subr.mxu0 0.0
          %486 = vmatpush1.msra.mxu0 0.0
          %487 = vmatprep.subr.mxu0 0.0
          %488 = vmatpush1.msra.mxu0 0.0
          %489 = vmatprep.subr.mxu0 0.0
          %490 = vmatpush1.msra.mxu0 0.0
          %491 = vmatprep.subr.mxu0 0.0
          %492 = vmatpush1.msra.mxu0 0.0
          %493 = vmatprep.subr.mxu0 0.0
          %494 = vmatpush1.msra.mxu0 0.0
          %495 = vmatprep.subr.mxu0 0.0
          %496 = vmatpush1.msra.mxu0 0.0
          %497 = vmatprep.subr.mxu0 0.0
          %498 = vmatpush1.msra.mxu0 0.0
          %499 = vmatprep.subr.mxu0 0.0
          %500 = vmatpush1.msra.mxu0 0.0
          %501 = vmatprep.subr.mxu0 0.0
          %502 = vmatpush1.msra.mxu0 0.0
          %503 = vmatprep.subr.mxu0 0.0
          %504 = vmatpush1.msra.mxu0 0.0
          %505 = vmatprep.subr.mxu0 0.0
          %506 = vmatpush1.msra.mxu0 0.0
          %507 = vmatprep.subr.mxu0 0.0
          %508 = vmatpush1.msra.mxu0 0.0
          %509 = vmatprep.subr.mxu0 0.0
          %510 = vmatpush1.msra.mxu0 0.0
          %511 = vmatprep.subr.mxu0 0.0
          %512 = vmatpush1.msra.mxu0 0.0
          %513 = vmatprep.subr.mxu0 0.0
          %514 = vmatpush1.msra.mxu0 0.0
          %515 = vmatprep.subr.mxu0 0.0
          %516 = vmatpush1.msra.mxu0 0.0
          %517 = vmatprep.subr.mxu0 0.0
          %518 = vmatpush1.msra.mxu0 0.0
          %519 = vmatprep.subr.mxu0 0.0
          %520 = vmatpush1.msra.mxu0 0.0
          %521 = vmatprep.subr.mxu0 0.0
          %522 = vmatpush1.msra.mxu0 0.0
          %523 = vmatprep.subr.mxu0 0.0
          %524 = vmatpush1.msra.mxu0 0.0
          %525 = vmatprep.subr.mxu0 0.0
          %526 = vmatpush1.msra.mxu0 0.0
          %527 = vmatprep.subr.mxu0 0.0
          %528 = vmatpush1.msra.mxu0 0.0
          %529 = vmatprep.subr.mxu0 0.0
          %530 = vmatpush1.msra.mxu0 0.0
          %531 = vmatprep.subr.mxu0 0.0
          %532 = vmatpush1.msra.mxu0 0.0
          %533 = vmatprep.mubr.f32.mxu0 0.0
          %534 = vmatmul.mubr.f32.gmra.mrb[0].mxu0 %v467
          %v535 = vpop.f32.mrb[0].mxu0
          %v536 = vadd.f32 %v463, %v535
          %v537 = vpop.f32.mrb[0].mxu0
          %538 = vdwg.mxu0
          %540 = vrot.lane.b32.xlu0 %v536, 120
          %v541 = vpop.permute.xlu0 %540
          %vm542 = vcmask 64512
          %v543 = vsel %vm542, %v536, 0
          %v545 = vsel %vm542, %v541, 0
          %547 = vmatprep.subr.mxu0 0.0
          %548 = vmatpush1.xpose.msra.mxu0 %v545
          %549 = vmatprep.subr.mxu0 0.0
          %550 = vmatpush1.xpose.msra.mxu0 0.0
          %551 = vmatprep.subr.mxu0 0.0
          %552 = vmatpush1.xpose.msra.mxu0 0.0
          %553 = vmatprep.subr.mxu0 0.0
          %554 = vmatpush1.xpose.msra.mxu0 0.0
          %555 = vmatprep.subr.mxu0 0.0
          %556 = vmatpush1.xpose.msra.mxu0 0.0
          %557 = vmatprep.subr.mxu0 0.0
          %558 = vmatpush1.xpose.msra.mxu0 0.0
          %559 = vmatprep.subr.mxu0 0.0
          %560 = vmatpush1.xpose.msra.mxu0 0.0
          %561 = vmatprep.subr.mxu0 0.0
          %562 = vmatpush1.xpose.msra.mxu0 0.0
          %563 = vmatprep.subr.mxu0 0.0
          %564 = vmatpush1.xpose.msra.mxu0 0.0
          %565 = vmatprep.subr.mxu0 0.0
          %566 = vmatpush1.xpose.msra.mxu0 0.0
          %567 = vmatprep.subr.mxu0 0.0
          %568 = vmatpush1.xpose.msra.mxu0 0.0
          %569 = vmatprep.subr.mxu0 0.0
          %570 = vmatpush1.xpose.msra.mxu0 0.0
          %571 = vmatprep.subr.mxu0 0.0
          %572 = vmatpush1.xpose.msra.mxu0 0.0
          %573 = vmatprep.subr.mxu0 0.0
          %574 = vmatpush1.xpose.msra.mxu0 0.0
          %575 = vmatprep.subr.mxu0 0.0
          %576 = vmatpush1.xpose.msra.mxu0 0.0
          %577 = vmatprep.subr.mxu0 0.0
          %578 = vmatpush1.xpose.msra.mxu0 0.0
          %579 = vmatprep.subr.mxu0 0.0
          %580 = vmatpush1.xpose.msra.mxu0 0.0
          %581 = vmatprep.subr.mxu0 0.0
          %582 = vmatpush1.xpose.msra.mxu0 0.0
          %583 = vmatprep.subr.mxu0 0.0
          %584 = vmatpush1.xpose.msra.mxu0 0.0
          %585 = vmatprep.subr.mxu0 0.0
          %586 = vmatpush1.xpose.msra.mxu0 0.0
          %587 = vmatprep.subr.mxu0 0.0
          %588 = vmatpush1.xpose.msra.mxu0 0.0
          %589 = vmatprep.subr.mxu0 0.0
          %590 = vmatpush1.xpose.msra.mxu0 0.0
          %591 = vmatprep.subr.mxu0 0.0
          %592 = vmatpush1.xpose.msra.mxu0 0.0
          %593 = vmatprep.subr.mxu0 0.0
          %594 = vmatpush1.xpose.msra.mxu0 0.0
          %595 = vmatprep.subr.mxu0 0.0
          %596 = vmatpush1.xpose.msra.mxu0 0.0
          %597 = vmatprep.subr.mxu0 0.0
          %598 = vmatpush1.xpose.msra.mxu0 0.0
          %599 = vmatprep.subr.mxu0 0.0
          %600 = vmatpush1.xpose.msra.mxu0 0.0
          %601 = vmatprep.subr.mxu0 0.0
          %602 = vmatpush1.xpose.msra.mxu0 0.0
          %603 = vmatprep.subr.mxu0 0.0
          %604 = vmatpush1.xpose.msra.mxu0 0.0
          %605 = vmatprep.subr.mxu0 0.0
          %606 = vmatpush1.xpose.msra.mxu0 0.0
          %607 = vmatprep.subr.mxu0 0.0
          %608 = vmatpush1.xpose.msra.mxu0 0.0
          %609 = vmatprep.subr.mxu0 0.0
          %610 = vmatpush1.xpose.msra.mxu0 0.0
          %611 = vmatprep.mubr.f32.mxu0 0.0
          %612 = vmatmul.mubr.f32.gmra.mrb[0].mxu0 %v543
          %v613 = vpop.f32.mrb[0].mxu0
          %v614 = vadd.f32 0.0, %v613
          %v615 = vpop.f32.mrb[0].mxu0
          %616 = vdwg.mxu0
          %v617 = vsel %vm542, %v614, -inf
          %618 = vmax.xlane.f32.xlu0 %v617
          %v619 = vpop.xlane.xlu0 %618
          %v620 = vsub.f32 %v614, %v619
          %v621 = vmul.f32 %v620, 1.442695
          %v622 = vpow.pop %v621
          %v623 = vsel %vm542, %v622, 0.0
          %624 = vadd.xlane.f32.xlu0 %v623
          %v625 = vpop.xlane.xlu0 %624
          %626 = vrot.lane.b32.xlu0 %v536, 112
          %v627 = vpop.permute.xlu0 %626
          %v630 = vsel %vm542, %v622, 0
          %632 = vmatprep.subr.mxu0 0.0
          %633 = vmatpush1.msra.mxu0 %v627
          %634 = vmatprep.subr.mxu0 0.0
          %635 = vmatpush1.msra.mxu0 0.0
          %636 = vmatprep.subr.mxu0 0.0
          %637 = vmatpush1.msra.mxu0 0.0
          %638 = vmatprep.subr.mxu0 0.0
          %639 = vmatpush1.msra.mxu0 0.0
          %640 = vmatprep.subr.mxu0 0.0
          %641 = vmatpush1.msra.mxu0 0.0
          %642 = vmatprep.subr.mxu0 0.0
          %643 = vmatpush1.msra.mxu0 0.0
          %644 = vmatprep.subr.mxu0 0.0
          %645 = vmatpush1.msra.mxu0 0.0
          %646 = vmatprep.subr.mxu0 0.0
          %647 = vmatpush1.msra.mxu0 0.0
          %648 = vmatprep.subr.mxu0 0.0
          %649 = vmatpush1.msra.mxu0 0.0
          %650 = vmatprep.subr.mxu0 0.0
          %651 = vmatpush1.msra.mxu0 0.0
          %652 = vmatprep.subr.mxu0 0.0
          %653 = vmatpush1.msra.mxu0 0.0
          %654 = vmatprep.subr.mxu0 0.0
          %655 = vmatpush1.msra.mxu0 0.0
          %656 = vmatprep.subr.mxu0 0.0
          %657 = vmatpush1.msra.mxu0 0.0
          %658 = vmatprep.subr.mxu0 0.0
          %659 = vmatpush1.msra.mxu0 0.0
          %660 = vmatprep.subr.mxu0 0.0
          %661 = vmatpush1.msra.mxu0 0.0
          %662 = vmatprep.subr.mxu0 0.0
          %663 = vmatpush1.msra.mxu0 0.0
          %664 = vmatprep.subr.mxu0 0.0
          %665 = vmatpush1.msra.mxu0 0.0
          %666 = vmatprep.subr.mxu0 0.0
          %667 = vmatpush1.msra.mxu0 0.0
          %668 = vmatprep.subr.mxu0 0.0
          %669 = vmatpush1.msra.mxu0 0.0
          %670 = vmatprep.subr.mxu0 0.0
          %671 = vmatpush1.msra.mxu0 0.0
          %672 = vmatprep.subr.mxu0 0.0
          %673 = vmatpush1.msra.mxu0 0.0
          %674 = vmatprep.subr.mxu0 0.0
          %675 = vmatpush1.msra.mxu0 0.0
          %676 = vmatprep.subr.mxu0 0.0
          %677 = vmatpush1.msra.mxu0 0.0
          %678 = vmatprep.subr.mxu0 0.0
          %679 = vmatpush1.msra.mxu0 0.0
          %680 = vmatprep.subr.mxu0 0.0
          %681 = vmatpush1.msra.mxu0 0.0
          %682 = vmatprep.subr.mxu0 0.0
          %683 = vmatpush1.msra.mxu0 0.0
          %684 = vmatprep.subr.mxu0 0.0
          %685 = vmatpush1.msra.mxu0 0.0
          %686 = vmatprep.subr.mxu0 0.0
          %687 = vmatpush1.msra.mxu0 0.0
          %688 = vmatprep.subr.mxu0 0.0
          %689 = vmatpush1.msra.mxu0 0.0
          %690 = vmatprep.subr.mxu0 0.0
          %691 = vmatpush1.msra.mxu0 0.0
          %692 = vmatprep.subr.mxu0 0.0
          %693 = vmatpush1.msra.mxu0 0.0
          %694 = vmatprep.subr.mxu0 0.0
          %695 = vmatpush1.msra.mxu0 0.0
          %696 = vmatprep.mubr.f32.mxu0 0.0
          %697 = vmatmul.mubr.f32.gmra.mrb[0].mxu0 %v630
          %v698 = vpop.f32.mrb[0].mxu0
          %v699 = vadd.f32 0.0, %v698
          %v700 = vpop.f32.mrb[0].mxu0
          %701 = vdwg.mxu0
          %v702 = vrcp.pop %v625
          %v703 = vmul.f32 %v699, %v702
          %s704 = smul.u32 %s445, 8
          %s705 = scalar_lea.vmem %s3, %s704
          %v706 = vld [vmem:[%s705] sm:$0xff]
          %v708 = vsel %vm542, %v703, 0
          %710 = vmatprep.subr.mxu0 0.0
          %711 = vmatpush1.msra.mxu0 %v706
          %712 = vmatprep.subr.mxu0 0.0
          %713 = vmatpush1.msra.mxu0 0.0
          %714 = vmatprep.subr.mxu0 0.0
          %715 = vmatpush1.msra.mxu0 0.0
          %716 = vmatprep.subr.mxu0 0.0
          %717 = vmatpush1.msra.mxu0 0.0
          %718 = vmatprep.subr.mxu0 0.0
          %719 = vmatpush1.msra.mxu0 0.0
          %720 = vmatprep.subr.mxu0 0.0
          %721 = vmatpush1.msra.mxu0 0.0
          %722 = vmatprep.subr.mxu0 0.0
          %723 = vmatpush1.msra.mxu0 0.0
          %724 = vmatprep.subr.mxu0 0.0
          %725 = vmatpush1.msra.mxu0 0.0
          %726 = vmatprep.subr.mxu0 0.0
          %727 = vmatpush1.msra.mxu0 0.0
          %728 = vmatprep.subr.mxu0 0.0
          %729 = vmatpush1.msra.mxu0 0.0
          %730 = vmatprep.subr.mxu0 0.0
          %731 = vmatpush1.msra.mxu0 0.0
          %732 = vmatprep.subr.mxu0 0.0
          %733 = vmatpush1.msra.mxu0 0.0
          %734 = vmatprep.subr.mxu0 0.0
          %735 = vmatpush1.msra.mxu0 0.0
          %736 = vmatprep.subr.mxu0 0.0
          %737 = vmatpush1.msra.mxu0 0.0
          %738 = vmatprep.subr.mxu0 0.0
          %739 = vmatpush1.msra.mxu0 0.0
          %740 = vmatprep.subr.mxu0 0.0
          %741 = vmatpush1.msra.mxu0 0.0
          %742 = vmatprep.subr.mxu0 0.0
          %743 = vmatpush1.msra.mxu0 0.0
          %744 = vmatprep.subr.mxu0 0.0
          %745 = vmatpush1.msra.mxu0 0.0
          %746 = vmatprep.subr.mxu0 0.0
          %747 = vmatpush1.msra.mxu0 0.0
          %748 = vmatprep.subr.mxu0 0.0
          %749 = vmatpush1.msra.mxu0 0.0
          %750 = vmatprep.subr.mxu0 0.0
          %751 = vmatpush1.msra.mxu0 0.0
          %752 = vmatprep.subr.mxu0 0.0
          %753 = vmatpush1.msra.mxu0 0.0
          %754 = vmatprep.subr.mxu0 0.0
          %755 = vmatpush1.msra.mxu0 0.0
          %756 = vmatprep.subr.mxu0 0.0
          %757 = vmatpush1.msra.mxu0 0.0
          %758 = vmatprep.subr.mxu0 0.0
          %759 = vmatpush1.msra.mxu0 0.0
          %760 = vmatprep.subr.mxu0 0.0
          %761 = vmatpush1.msra.mxu0 0.0
          %762 = vmatprep.subr.mxu0 0.0
          %763 = vmatpush1.msra.mxu0 0.0
          %764 = vmatprep.subr.mxu0 0.0
          %765 = vmatpush1.msra.mxu0 0.0
          %766 = vmatprep.subr.mxu0 0.0
          %767 = vmatpush1.msra.mxu0 0.0
          %768 = vmatprep.subr.mxu0 0.0
          %769 = vmatpush1.msra.mxu0 0.0
          %770 = vmatprep.subr.mxu0 0.0
          %771 = vmatpush1.msra.mxu0 0.0
          %772 = vmatprep.subr.mxu0 0.0
          %773 = vmatpush1.msra.mxu0 0.0
          %774 = vmatprep.mubr.f32.mxu0 0.0
          %775 = vmatmul.mubr.f32.gmra.mrb[0].mxu0 %v708
          %v776 = vpop.f32.mrb[0].mxu0
          %v777 = vadd.f32 0.0, %v776
          %v778 = vpop.f32.mrb[0].mxu0
          %779 = vdwg.mxu0
          %v780 = vadd.f32 %v450, %v777
        $region77: #{tpu_custom_call.1} parent=71 // loop_footer
          %s449 = sadd.s32 1, %s445
        $region78: #{tpu_custom_call.1} parent=71 // loop_footer_branch
          %444 = sbr.rel target = $region74
        $region79: #{tpu_custom_call.1} parent=71 // loop_exit
          _
        %v781 = vadd.f32 %v436, %v450
        %vm782 = vcmask 261120
        %v783 = vsel %vm782, %v781, 0.0
        %784 = vadd.xlane.f32.xlu0 %v783
        %v785 = vpop.xlane.xlu0 %784
        %v786 = vrcp.pop 32.0
        %v787 = vmul.f32 %v785, %v786
        %v788 = vsub.f32 %v781, %v787
        %v789 = vmul.f32 %v788, %v788
        %v790 = vsel %vm782, %v789, 0.0
        %791 = vadd.xlane.f32.xlu0 %v790
        %v792 = vpop.xlane.xlu0 %791
        %v793 = vmul.f32 %v792, %v786
        %v794 = vadd.f32 %v793, 1e-05
        %v795 = vrsqrt.pop %v794
        %v796 = vmul.f32 %v788, %v795
        %v797 = vld [vmem:[%s9] sm:$0x1]
        %v799 = vlaneseq
        %v800 = vshrl.u32 %v799, 7
        %v801 = vsub.s32 0, %v800
        %v802 = vrot.slane %v797, %v801
        %v804 = vmul.f32 %v796, %v802
        %v805 = vld [vmem:[%s10] sm:$0x1]
        %v807 = vlaneseq
        %v808 = vshrl.u32 %v807, 7
        %v809 = vsub.s32 0, %v808
        %v810 = vrot.slane %v805, %v809
        %v812 = vadd.f32 %v804, %v810
        %v813 = vld [vmem:[%s8] sm:$0x1]
        %v815 = vlaneseq
        %v816 = vshrl.u32 %v815, 7
        %v817 = vsub.s32 0, %v816
        %v818 = vrot.slane %v813, %v817
        %v820 = vld [vmem:[%s5] sm:$0xff]
        %v821 = vld [vmem:[%s5 + $0x8] sm:$0xff]
        %v822 = vld [vmem:[%s5 + $0x10] sm:$0xff]
        %v823 = vld [vmem:[%s5 + $0x18] sm:$0xff]
        %v824 = vld [vmem:[%s6] sm:$0x1]
        %v826 = vlaneseq
        %v827 = vshrl.u32 %v826, 7
        %v828 = vsub.s32 0, %v827
        %v829 = vrot.slane %v824, %v828
        %v832 = vsel %vm782, %v812, 0
        %834 = vmatprep.subr.mxu0 0.0
        %835 = vmatpush1.msra.mxu0 %v820
        %836 = vmatprep.subr.mxu0 0.0
        %837 = vmatpush1.msra.mxu0 %v821
        %838 = vmatprep.subr.mxu0 0.0
        %839 = vmatpush1.msra.mxu0 %v822
        %840 = vmatprep.subr.mxu0 0.0
        %841 = vmatpush1.msra.mxu0 %v823
        %842 = vmatprep.subr.mxu0 0.0
        %843 = vmatpush1.msra.mxu0 0.0
        %844 = vmatprep.subr.mxu0 0.0
        %845 = vmatpush1.msra.mxu0 0.0
        %846 = vmatprep.subr.mxu0 0.0
        %847 = vmatpush1.msra.mxu0 0.0
        %848 = vmatprep.subr.mxu0 0.0
        %849 = vmatpush1.msra.mxu0 0.0
        %850 = vmatprep.subr.mxu0 0.0
        %851 = vmatpush1.msra.mxu0 0.0
        %852 = vmatprep.subr.mxu0 0.0
        %853 = vmatpush1.msra.mxu0 0.0
        %854 = vmatprep.subr.mxu0 0.0
        %855 = vmatpush1.msra.mxu0 0.0
        %856 = vmatprep.subr.mxu0 0.0
        %857 = vmatpush1.msra.mxu0 0.0
        %858 = vmatprep.subr.mxu0 0.0
        %859 = vmatpush1.msra.mxu0 0.0
        %860 = vmatprep.subr.mxu0 0.0
        %861 = vmatpush1.msra.mxu0 0.0
        %862 = vmatprep.subr.mxu0 0.0
        %863 = vmatpush1.msra.mxu0 0.0
        %864 = vmatprep.subr.mxu0 0.0
        %865 = vmatpush1.msra.mxu0 0.0
        %866 = vmatprep.subr.mxu0 0.0
        %867 = vmatpush1.msra.mxu0 0.0
        %868 = vmatprep.subr.mxu0 0.0
        %869 = vmatpush1.msra.mxu0 0.0
        %870 = vmatprep.subr.mxu0 0.0
        %871 = vmatpush1.msra.mxu0 0.0
        %872 = vmatprep.subr.mxu0 0.0
        %873 = vmatpush1.msra.mxu0 0.0
        %874 = vmatprep.subr.mxu0 0.0
        %875 = vmatpush1.msra.mxu0 0.0
        %876 = vmatprep.subr.mxu0 0.0
        %877 = vmatpush1.msra.mxu0 0.0
        %878 = vmatprep.subr.mxu0 0.0
        %879 = vmatpush1.msra.mxu0 0.0
        %880 = vmatprep.subr.mxu0 0.0
        %881 = vmatpush1.msra.mxu0 0.0
        %882 = vmatprep.subr.mxu0 0.0
        %883 = vmatpush1.msra.mxu0 0.0
        %884 = vmatprep.subr.mxu0 0.0
        %885 = vmatpush1.msra.mxu0 0.0
        %886 = vmatprep.subr.mxu0 0.0
        %887 = vmatpush1.msra.mxu0 0.0
        %888 = vmatprep.subr.mxu0 0.0
        %889 = vmatpush1.msra.mxu0 0.0
        %890 = vmatprep.subr.mxu0 0.0
        %891 = vmatpush1.msra.mxu0 0.0
        %892 = vmatprep.subr.mxu0 0.0
        %893 = vmatpush1.msra.mxu0 0.0
        %894 = vmatprep.subr.mxu0 0.0
        %895 = vmatpush1.msra.mxu0 0.0
        %896 = vmatprep.subr.mxu0 0.0
        %897 = vmatpush1.msra.mxu0 0.0
        %898 = vmatprep.mubr.f32.mxu0 0.0
        %899 = vmatmul.mubr.f32.gmra.mrb[0].mxu0 %v832
        %v900 = vpop.f32.mrb[0].mxu0
        %v901 = vadd.f32 %v829, %v900
        %v902 = vpop.f32.mrb[0].mxu0
        %903 = vdwg.mxu0
        %v904 = vmax.f32 %v901, 0.0
        %v905 = vld [vmem:[%s7] sm:$0xff]
        %v906 = vld [vmem:[%s7 + $0x8] sm:$0xff]
        %v907 = vld [vmem:[%s7 + $0x10] sm:$0xff]
        %v908 = vld [vmem:[%s7 + $0x18] sm:$0xff]
        %v909 = vld [vmem:[%s7 + $0x20] sm:$0xff]
        %v910 = vld [vmem:[%s7 + $0x28] sm:$0xff]
        %v911 = vld [vmem:[%s7 + $0x30] sm:$0xff]
        %v912 = vld [vmem:[%s7 + $0x38] sm:$0xff]
        %v913 = vld [vmem:[%s7 + $0x40] sm:$0xff]
        %v914 = vld [vmem:[%s7 + $0x48] sm:$0xff]
        %v915 = vld [vmem:[%s7 + $0x50] sm:$0xff]
        %v916 = vld [vmem:[%s7 + $0x58] sm:$0xff]
        %v917 = vld [vmem:[%s7 + $0x60] sm:$0xff]
        %v918 = vld [vmem:[%s7 + $0x68] sm:$0xff]
        %v919 = vld [vmem:[%s7 + $0x70] sm:$0xff]
        %v920 = vld [vmem:[%s7 + $0x78] sm:$0xff]
        %921 = vmatprep.subr.mxu0 0.0
        %922 = vmatpush1.msra.mxu0 %v905
        %923 = vmatprep.subr.mxu0 0.0
        %924 = vmatpush1.msra.mxu0 %v906
        %925 = vmatprep.subr.mxu0 0.0
        %926 = vmatpush1.msra.mxu0 %v907
        %927 = vmatprep.subr.mxu0 0.0
        %928 = vmatpush1.msra.mxu0 %v908
        %929 = vmatprep.subr.mxu0 0.0
        %930 = vmatpush1.msra.mxu0 %v909
        %931 = vmatprep.subr.mxu0 0.0
        %932 = vmatpush1.msra.mxu0 %v910
        %933 = vmatprep.subr.mxu0 0.0
        %934 = vmatpush1.msra.mxu0 %v911
        %935 = vmatprep.subr.mxu0 0.0
        %936 = vmatpush1.msra.mxu0 %v912
        %937 = vmatprep.subr.mxu0 0.0
        %938 = vmatpush1.msra.mxu0 %v913
        %939 = vmatprep.subr.mxu0 0.0
        %940 = vmatpush1.msra.mxu0 %v914
        %941 = vmatprep.subr.mxu0 0.0
        %942 = vmatpush1.msra.mxu0 %v915
        %943 = vmatprep.subr.mxu0 0.0
        %944 = vmatpush1.msra.mxu0 %v916
        %945 = vmatprep.subr.mxu0 0.0
        %946 = vmatpush1.msra.mxu0 %v917
        %947 = vmatprep.subr.mxu0 0.0
        %948 = vmatpush1.msra.mxu0 %v918
        %949 = vmatprep.subr.mxu0 0.0
        %950 = vmatpush1.msra.mxu0 %v919
        %951 = vmatprep.subr.mxu0 0.0
        %952 = vmatpush1.msra.mxu0 %v920
        %953 = vmatprep.subr.mxu0 0.0
        %954 = vmatpush1.msra.mxu0 0.0
        %955 = vmatprep.subr.mxu0 0.0
        %956 = vmatpush1.msra.mxu0 0.0
        %957 = vmatprep.subr.mxu0 0.0
        %958 = vmatpush1.msra.mxu0 0.0
        %959 = vmatprep.subr.mxu0 0.0
        %960 = vmatpush1.msra.mxu0 0.0
        %961 = vmatprep.subr.mxu0 0.0
        %962 = vmatpush1.msra.mxu0 0.0
        %963 = vmatprep.subr.mxu0 0.0
        %964 = vmatpush1.msra.mxu0 0.0
        %965 = vmatprep.subr.mxu0 0.0
        %966 = vmatpush1.msra.mxu0 0.0
        %967 = vmatprep.subr.mxu0 0.0
        %968 = vmatpush1.msra.mxu0 0.0
        %969 = vmatprep.subr.mxu0 0.0
        %970 = vmatpush1.msra.mxu0 0.0
        %971 = vmatprep.subr.mxu0 0.0
        %972 = vmatpush1.msra.mxu0 0.0
        %973 = vmatprep.subr.mxu0 0.0
        %974 = vmatpush1.msra.mxu0 0.0
        %975 = vmatprep.subr.mxu0 0.0
        %976 = vmatpush1.msra.mxu0 0.0
        %977 = vmatprep.subr.mxu0 0.0
        %978 = vmatpush1.msra.mxu0 0.0
        %979 = vmatprep.subr.mxu0 0.0
        %980 = vmatpush1.msra.mxu0 0.0
        %981 = vmatprep.subr.mxu0 0.0
        %982 = vmatpush1.msra.mxu0 0.0
        %983 = vmatprep.subr.mxu0 0.0
        %984 = vmatpush1.msra.mxu0 0.0
        %985 = vmatprep.mubr.f32.mxu0 0.0
        %986 = vmatmul.mubr.f32.gmra.mrb[0].mxu0 %v904
        %v987 = vpop.f32.mrb[0].mxu0
        %v988 = vadd.f32 0.0, %v987
        %v989 = vpop.f32.mrb[0].mxu0
        %990 = vdwg.mxu0
        %v991 = vadd.f32 %v818, %v988
        %v992 = vadd.f32 %v812, %v991
        %v993 = vsel %vm782, %v992, 0.0
        %994 = vadd.xlane.f32.xlu0 %v993
        %v995 = vpop.xlane.xlu0 %994
        %v996 = vmul.f32 %v995, %v786
        %v997 = vsub.f32 %v992, %v996
        %v998 = vmul.f32 %v997, %v997
        %v999 = vsel %vm782, %v998, 0.0
        %1000 = vadd.xlane.f32.xlu0 %v999
        %v1001 = vpop.xlane.xlu0 %1000
        %v1002 = vmul.f32 %v1001, %v786
        %v1003 = vadd.f32 %v1002, 1e-05
        %v1004 = vrsqrt.pop %v1003
        %v1005 = vmul.f32 %v997, %v1004
        %v1006 = vld [vmem:[%s11] sm:$0x1]
        %v1008 = vlaneseq
        %v1009 = vshrl.u32 %v1008, 7
        %v1010 = vsub.s32 0, %v1009
        %v1011 = vrot.slane %v1006, %v1010
        %v1013 = vmul.f32 %v1005, %v1011
        %v1014 = vld [vmem:[%s12] sm:$0x1]
        %v1016 = vlaneseq
        %v1017 = vshrl.u32 %v1016, 7
        %v1018 = vsub.s32 0, %v1017
        %v1019 = vrot.slane %v1014, %v1018
        %v1021 = vadd.f32 %v1013, %v1019
        %1022 = vst.msk [vmem:[%s431] sm:$0xff] %vm782, %v1021
        %s1023 = sand.u32 %s313, 1
        %s1024 = scalar_lea.sflag [#allocation3], %s1023
        %s1025 = sand.u32 %s313, 1
        %s1026 = smul.addr %s1025, 8
        %s1027 = scalar_lea.vmem [#allocation2], %s1026
        // Predicated region
        $region80: #{tpu_custom_call.1} parent=71 // pred_check
          %p1028 = pneg %p323
        $region81: #{tpu_custom_call.1} parent=71 // pred_check_branch
          %1030 = sbr.rel (%p1028) target = $region83
        $region82: #{tpu_custom_call.1} parent=71 // pred_region
          %s1032 = ssub.s32 128, 128
          %1033 = vsyncadd %s1024, %s1032
          %s1034 = smul.addr %s27, 128
          %s1035 = scalar_lea.hbm %s13, %s1034
          %s1037 = sshll.u32 %s1027, 4
          %s1038 = int_to_ptr.vmem [resolvable:$true] %s1037
          %1040 = dma.vmem_to_hbm [thread:$0]  %s1038, 128, %s1035, %s1024
        $region83: #{tpu_custom_call.1} parent=71 // pred_fallthru
          _
      $region72: #{tpu_custom_call.1} parent=5 // pred_fallthru
        _
      %p1041 = scmp.le.s32.totalorder 2, %s22
      // Predicated region
      $region84: #{tpu_custom_call.1} parent=5 // pred_check
        %p1042 = pneg %p1041
      $region85: #{tpu_custom_call.1} parent=5 // pred_check_branch
        %1044 = sbr.rel (%p1042) target = $region87
      $region86: #{tpu_custom_call.1} parent=5 // pred_region
        %s1045 = ssub.s32 %s22, 2
        // Predicated region
        $region88: #{tpu_custom_call.1} parent=86 // pred_check
          %p1046 = pneg %p329
        $region89: #{tpu_custom_call.1} parent=86 // pred_check_branch
          %1048 = sbr.rel (%p1046) target = $region91
        $region90: #{tpu_custom_call.1} parent=86 // pred_region
          %s1049 = sand.u32 %s314, 1
          %s1050 = scalar_lea.sflag [#allocation3], %s1049
          %s1051 = sand.u32 %s314, 1
          %s1052 = smul.addr %s1051, 8
          %s1053 = scalar_lea.vmem [#allocation2], %s1052
          %1054 = dma.done %s1050, 128
        $region91: #{tpu_custom_call.1} parent=86 // pred_fallthru
          _
      $region87: #{tpu_custom_call.1} parent=5 // pred_fallthru
        _
    $region6: #{tpu_custom_call.1} parent=1 // loop_footer
      %s26 = sadd.s32 1, %s22
    $region7: #{tpu_custom_call.1} parent=1 // loop_footer_branch
      %21 = sbr.rel target = $region3
    $region8: #{tpu_custom_call.1} parent=1 // loop_exit
      _
    %1055 = vsyncpa [#allocation3], 1
    %s1056 = scalar_lea.sflag [#allocation3], 1
    %1057 = vsyncpa %s1056, 1

</llo_original>
